<compile_context>
chip_gen: v5e
topology: v5e:2x2
jax: 0.10.0
libtpu: 0.0.40
codegen_flags: <defaults>
</compile_context>

<pallas_src>
import jax
import jax.numpy as jnp
from jax.experimental import pallas as pl
from jax.experimental.pallas import tpu as pltpu

LATENT_DIM = 8
X_DIM = 4
COND_DIM = 2
IN_DIM = X_DIM + COND_DIM   # 6
H1 = 64
H2 = 32
OUT_DIM = 2 * LATENT_DIM    # 16

DEFAULT_BLOCK_COLS = 8192   # batch tile (lane axis); ~5 MiB VMEM footprint
MIN_PALLAS_BATCH = 256      # below this, XLA-fused pure-JAX is faster
_VMEM_LIMIT_BYTES = 48 * 1024 * 1024  # < v7x 64 MiB physical, << v5e/v6e 128 MiB


def _round_up(n, m):
    return ((n + m - 1) // m) * m


def encoder_kernel(xc_ref, w1_ref, b1_ref, w2_ref, b2_ref, w3_ref, b3_ref,
                   o_ref):
    """Feature-minor MLP: batch is the lane (last) dimension.

    xc_ref : (6,  TB)  block of concat([x, cond], dim=1).T
    w*_ref : (out, in) transposed weights (VMEM-resident, constant index_map)
    b*_ref : (out, 1)
    o_ref  : (16, TB)  [mu; logvar] transposed block (lane-dense store)
    """
    xc = xc_ref[...]
    # Linear(6, 64) + ReLU -- single K=6 matmul (concat folded upstream).
    h = jnp.dot(w1_ref[...], xc, preferred_element_type=jnp.float32) + b1_ref[...]
    h = jnp.maximum(h, 0.0)
    # Linear(64, 32) + ReLU
    h = jnp.dot(w2_ref[...], h, preferred_element_type=jnp.float32) + b2_ref[...]
    h = jnp.maximum(h, 0.0)
    # Linear(32, 16)
    h = jnp.dot(w3_ref[...], h, preferred_element_type=jnp.float32) + b3_ref[...]
    o_ref[...] = h.astype(o_ref.dtype)


def encoder_forward(x, cond, params, *, block_cols=DEFAULT_BLOCK_COLS,
                    use_pallas=None):
    """x: (B, 4) f32, cond: (B, 2) f32 -> (mu, logvar), each (B, 8) f32."""
    B = x.shape[0]
    if B == 0:
        z = jnp.zeros((0, LATENT_DIM), jnp.float32)
        return z, z
    if use_pallas is None:
        use_pallas = B >= MIN_PALLAS_BATCH
    if not use_pallas:
        return encoder_ref(x, cond, params)

    w1, b1, w2, b2, w3, b3 = params
    # Transpose weights/biases once at trace time (feature-minor layout).
    w1t, w2t, w3t = w1.T, w2.T, w3.T        # (64, 6), (32, 64), (16, 32)
    b1t, b2t, b3t = b1.T, b2.T, b3.T        # (64, 1), (32, 1), (16, 1)

    # Batch tile on the lane axis: multiple of 128 (Pallas (8,128) rule).
    # Cap at ~ceil(B/2) so the "parallel" axis gives >= 2 tiles (v7x 2 TCs).
    block_cols = max(128, (block_cols // 128) * 128)
    TB = min(block_cols, _round_up((B + 1) // 2, 128))
    B_pad = _round_up(B, TB)

    # One fused HBM pass: concat -> transpose -> pad.  Kernel then streams a
    # lane-dense (6, TB) block; padded columns carry finite garbage sliced off
    # at the end.
    xcT = jnp.concatenate([x, cond], axis=1).T          # (6, B)
    if B_pad != B:
        xcT = jnp.pad(xcT, ((0, 0), (0, B_pad - B)))

    grid = (B_pad // TB,)

    batch_spec = lambda rows: pl.BlockSpec((rows, TB), lambda i: (0, i))
    const_spec = lambda a: pl.BlockSpec(a.shape, lambda i: (0, 0))

    flops = 2 * B_pad * (IN_DIM * H1 + H1 * H2 + H2 * OUT_DIM)
    bytes_accessed = 4 * (B_pad * (IN_DIM + OUT_DIM)
                          + IN_DIM * H1 + H1 * H2 + H2 * OUT_DIM
                          + H1 + H2 + OUT_DIM)

    hT = pl.pallas_call(
        encoder_kernel,
        out_shape=jax.ShapeDtypeStruct((OUT_DIM, B_pad), jnp.float32),
        grid=grid,
        in_specs=[
            batch_spec(IN_DIM),          # xc^T
            const_spec(w1t), const_spec(b1t),
            const_spec(w2t), const_spec(b2t),
            const_spec(w3t), const_spec(b3t),
        ],
        out_specs=batch_spec(OUT_DIM),
        compiler_params=pltpu.CompilerParams(
            dimension_semantics=("parallel",),
            vmem_limit_bytes=_VMEM_LIMIT_BYTES),
        cost_estimate=pl.CostEstimate(
            flops=flops, transcendentals=0, bytes_accessed=bytes_accessed),
    )(xcT, w1t, b1t, w2t, b2t, w3t, b3t)

    # chunk(2, dim=1): slice in the transposed layout, transpose back once.
    mu = hT[:LATENT_DIM, :B].T
    logvar = hT[LATENT_DIM:, :B].T
    return mu, logvar


def init_params(key):
    """Deterministic init matching nn.Linear shapes (stored as (in, out))."""
    ks = jax.random.split(key, 6)

    def linear(kw, kb, fan_in, fan_out):
        # PyTorch default: U(-1/sqrt(fan_in), 1/sqrt(fan_in))
        bound = 1.0 / jnp.sqrt(jnp.float32(fan_in))
        w = jax.random.uniform(kw, (fan_in, fan_out), jnp.float32, -bound, bound)
        b = jax.random.uniform(kb, (1, fan_out), jnp.float32, -bound, bound)
        return w, b

    w1, b1 = linear(ks[0], ks[1], IN_DIM, H1)
    w2, b2 = linear(ks[2], ks[3], H1, H2)
    w3, b3 = linear(ks[4], ks[5], H2, OUT_DIM)
    return (w1, b1, w2, b2, w3, b3)


def encoder_ref(x, cond, params):
    """Pure-JAX reference (also the small-batch fast path)."""
    w1, b1, w2, b2, w3, b3 = params
    xc = jnp.concatenate([x, cond], axis=1)
    h = jnp.maximum(xc @ w1 + b1, 0.0)
    h = jnp.maximum(h @ w2 + b2, 0.0)
    h = h @ w3 + b3
    return h[:, :LATENT_DIM], h[:, LATENT_DIM:]


if __name__ == "__main__":
    key = jax.random.PRNGKey(0)
    kp, kx, kc, kx2, kc2 = jax.random.split(key, 5)
    params = init_params(kp)

    # Small-shape test (B=2): force the Pallas path so the kernel runs.
    B = 2
    x = jax.random.normal(kx, (B, X_DIM), jnp.float32)
    cond = jax.random.normal(kc, (B, COND_DIM), jnp.float32)

    mu, logvar = encoder_forward(x, cond, params, use_pallas=True)
    jax.block_until_ready((mu, logvar))

    mu_ref, logvar_ref = encoder_ref(x, cond, params)
    assert mu.shape == (B, LATENT_DIM) and logvar.shape == (B, LATENT_DIM)
    assert jnp.allclose(mu, mu_ref, atol=1e-5, rtol=1e-5)
    assert jnp.allclose(logvar, logvar_ref, atol=1e-5, rtol=1e-5)

    # Larger, non-tile-multiple batch: exercises the grid + padding path.
    B2 = 300
    x2 = jax.random.normal(kx2, (B2, X_DIM), jnp.float32)
    cond2 = jax.random.normal(kc2, (B2, COND_DIM), jnp.float32)
    mu2, logvar2 = encoder_forward(x2, cond2, params, use_pallas=True,
                                   block_cols=128)
    jax.block_until_ready((mu2, logvar2))
    mu2_ref, logvar2_ref = encoder_ref(x2, cond2, params)
    assert jnp.allclose(mu2, mu2_ref, atol=1e-5, rtol=1e-5)
    assert jnp.allclose(logvar2, logvar2_ref, atol=1e-5, rtol=1e-5)

    print("KERNEL_OK")
</pallas_src>

<mosaic_0001>
module attributes {stable_mosaic.version = 11 : i64} {
  func.func @encoder_kernel(%arg0: i32, %arg1: memref<6x128xf32, #tpu.memory_space<vmem>>, %arg2: memref<64x6xf32, #tpu.memory_space<vmem>>, %arg3: memref<64x1xf32, #tpu.memory_space<vmem>>, %arg4: memref<32x64xf32, #tpu.memory_space<vmem>>, %arg5: memref<32x1xf32, #tpu.memory_space<vmem>>, %arg6: memref<16x32xf32, #tpu.memory_space<vmem>>, %arg7: memref<16x1xf32, #tpu.memory_space<vmem>>, %arg8: memref<16x128xf32, #tpu.memory_space<vmem>>) attributes {dimension_semantics = [#tpu.dimension_semantics<parallel>], iteration_bounds = array<i64: 1>, scalar_prefetch = 0 : i64, scratch_operands = 0 : i64, tpu.core_type = #tpu.core_type<tc>, window_params = [{transform_indices = @transform_0, window_bounds = array<i64: 6, 128>}, {pipeline_mode = #tpu.pipeline_mode<synchronous>, transform_indices = @transform_1, window_bounds = array<i64: 64, 6>}, {pipeline_mode = #tpu.pipeline_mode<synchronous>, transform_indices = @transform_2, window_bounds = array<i64: 64, 1>}, {pipeline_mode = #tpu.pipeline_mode<synchronous>, transform_indices = @transform_3, window_bounds = array<i64: 32, 64>}, {pipeline_mode = #tpu.pipeline_mode<synchronous>, transform_indices = @transform_4, window_bounds = array<i64: 32, 1>}, {pipeline_mode = #tpu.pipeline_mode<synchronous>, transform_indices = @transform_5, window_bounds = array<i64: 16, 32>}, {pipeline_mode = #tpu.pipeline_mode<synchronous>, transform_indices = @transform_6, window_bounds = array<i64: 16, 1>}, {transform_indices = @transform_7, window_bounds = array<i64: 16, 128>}]} {
    %c0 = arith.constant 0 : index
    %c0_0 = arith.constant 0 : index
    %0 = vector.load %arg1[%c0, %c0_0] : memref<6x128xf32, #tpu.memory_space<vmem>>, vector<6x128xf32>
    %c0_1 = arith.constant 0 : index
    %c0_2 = arith.constant 0 : index
    %1 = vector.load %arg2[%c0_1, %c0_2] : memref<64x6xf32, #tpu.memory_space<vmem>>, vector<64x6xf32>
    %cst = arith.constant dense<0.000000e+00> : vector<64x128xf32>
    %2 = tpu.matmul %1, %0, %cst {dimension_numbers = #tpu.dot_dimension_numbers<[1], [0], [0], [1], [0, 0, 1, 1], [], []>} : vector<64x6xf32>, vector<6x128xf32>, vector<64x128xf32> -> vector<64x128xf32>
    %c0_3 = arith.constant 0 : index
    %c0_4 = arith.constant 0 : index
    %3 = vector.load %arg3[%c0_3, %c0_4] : memref<64x1xf32, #tpu.memory_space<vmem>>, vector<64x1xf32>
    %4 = vector.broadcast %3 : vector<64x1xf32> to vector<64x128xf32>
    %5 = arith.addf %2, %4 : vector<64x128xf32>
    %cst_5 = arith.constant 0.000000e+00 : f32
    %6 = vector.broadcast %cst_5 : f32 to vector<64x128xf32>
    %7 = arith.maximumf %5, %6 : vector<64x128xf32>
    %c0_6 = arith.constant 0 : index
    %c0_7 = arith.constant 0 : index
    %8 = vector.load %arg4[%c0_6, %c0_7] : memref<32x64xf32, #tpu.memory_space<vmem>>, vector<32x64xf32>
    %cst_8 = arith.constant dense<0.000000e+00> : vector<32x128xf32>
    %9 = tpu.matmul %8, %7, %cst_8 {dimension_numbers = #tpu.dot_dimension_numbers<[1], [0], [0], [1], [0, 0, 1, 1], [], []>} : vector<32x64xf32>, vector<64x128xf32>, vector<32x128xf32> -> vector<32x128xf32>
    %c0_9 = arith.constant 0 : index
    %c0_10 = arith.constant 0 : index
    %10 = vector.load %arg5[%c0_9, %c0_10] : memref<32x1xf32, #tpu.memory_space<vmem>>, vector<32x1xf32>
    %11 = vector.broadcast %10 : vector<32x1xf32> to vector<32x128xf32>
    %12 = arith.addf %9, %11 : vector<32x128xf32>
    %cst_11 = arith.constant 0.000000e+00 : f32
    %13 = vector.broadcast %cst_11 : f32 to vector<32x128xf32>
    %14 = arith.maximumf %12, %13 : vector<32x128xf32>
    %c0_12 = arith.constant 0 : index
    %c0_13 = arith.constant 0 : index
    %15 = vector.load %arg6[%c0_12, %c0_13] : memref<16x32xf32, #tpu.memory_space<vmem>>, vector<16x32xf32>
    %cst_14 = arith.constant dense<0.000000e+00> : vector<16x128xf32>
    %16 = tpu.matmul %15, %14, %cst_14 {dimension_numbers = #tpu.dot_dimension_numbers<[1], [0], [0], [1], [0, 0, 1, 1], [], []>} : vector<16x32xf32>, vector<32x128xf32>, vector<16x128xf32> -> vector<16x128xf32>
    %c0_15 = arith.constant 0 : index
    %c0_16 = arith.constant 0 : index
    %17 = vector.load %arg7[%c0_15, %c0_16] : memref<16x1xf32, #tpu.memory_space<vmem>>, vector<16x1xf32>
    %18 = vector.broadcast %17 : vector<16x1xf32> to vector<16x128xf32>
    %19 = arith.addf %16, %18 : vector<16x128xf32>
    %c0_17 = arith.constant 0 : index
    %c0_18 = arith.constant 0 : index
    %20 = vector.load %arg8[%c0_17, %c0_18] : memref<16x128xf32, #tpu.memory_space<vmem>>, vector<16x128xf32>
    tpu.vector_store %arg8[%c0_17, %c0_18], %19 {strides = array<i32>} : memref<16x128xf32, #tpu.memory_space<vmem>>, vector<16x128xf32>,
    return
  }
  func.func @transform_0(%arg0: i32) -> (i32, i32) {
    %c0_i32 = arith.constant 0 : i32
    %c0_i32_0 = arith.constant 0 : i32
    return %c0_i32, %arg0 : i32, i32
  }
  func.func @transform_1(%arg0: i32) -> (i32, i32) {
    %c0_i32 = arith.constant 0 : i32
    %c0_i32_0 = arith.constant 0 : i32
    %c0_i32_1 = arith.constant 0 : i32
    return %c0_i32, %c0_i32_0 : i32, i32
  }
  func.func @transform_2(%arg0: i32) -> (i32, i32) {
    %c0_i32 = arith.constant 0 : i32
    %c0_i32_0 = arith.constant 0 : i32
    %c0_i32_1 = arith.constant 0 : i32
    return %c0_i32, %c0_i32_0 : i32, i32
  }
  func.func @transform_3(%arg0: i32) -> (i32, i32) {
    %c0_i32 = arith.constant 0 : i32
    %c0_i32_0 = arith.constant 0 : i32
    %c0_i32_1 = arith.constant 0 : i32
    return %c0_i32, %c0_i32_0 : i32, i32
  }
  func.func @transform_4(%arg0: i32) -> (i32, i32) {
    %c0_i32 = arith.constant 0 : i32
    %c0_i32_0 = arith.constant 0 : i32
    %c0_i32_1 = arith.constant 0 : i32
    return %c0_i32, %c0_i32_0 : i32, i32
  }
  func.func @transform_5(%arg0: i32) -> (i32, i32) {
    %c0_i32 = arith.constant 0 : i32
    %c0_i32_0 = arith.constant 0 : i32
    %c0_i32_1 = arith.constant 0 : i32
    return %c0_i32, %c0_i32_0 : i32, i32
  }
  func.func @transform_6(%arg0: i32) -> (i32, i32) {
    %c0_i32 = arith.constant 0 : i32
    %c0_i32_0 = arith.constant 0 : i32
    %c0_i32_1 = arith.constant 0 : i32
    return %c0_i32, %c0_i32_0 : i32, i32
  }
  func.func @transform_7(%arg0: i32) -> (i32, i32) {
    %c0_i32 = arith.constant 0 : i32
    %c0_i32_0 = arith.constant 0 : i32
    return %c0_i32, %arg0 : i32, i32
  }
}

</mosaic_0001>

<llo_original>
// kernel: tpu_custom_call.1
$region0: #{tpu_custom_call.1}
  #allocation0 [shape = 'u32[]', space=smem, size = 0x4, offset = 0x4, fixed_abs, tag = 'smem constant byte address 0x4 - core index']
  #allocation1 [shape = 'u32[72,128]{1,0:T(1,128)}', space=vmem, size = 0x9000, scoped, tag = 'internal scratch']
  %s0 = inlined_call_operand.vmem [shape: f32[6,128], index: 0, kind: input, shape index: {}]
  %s1 = inlined_call_operand.vmem [shape: f32[64,6], index: 1, kind: input, shape index: {}]
  %s2 = inlined_call_operand.vmem [shape: f32[64,1], index: 2, kind: input, shape index: {}]
  %s3 = inlined_call_operand.vmem [shape: f32[32,64], index: 3, kind: input, shape index: {}]
  %s4 = inlined_call_operand.vmem [shape: f32[32,1], index: 4, kind: input, shape index: {}]
  %s5 = inlined_call_operand.vmem [shape: f32[16,32], index: 5, kind: input, shape index: {}]
  %s6 = inlined_call_operand.vmem [shape: f32[16,1], index: 6, kind: input, shape index: {}]
  %s7 = inlined_call_operand.hbm [shape: f32[16,128], index: 7, kind: output, shape index: {}]
  %s8 = sld [smem:[#allocation0]]
  $region38: #{tpu_custom_call.1} parent=0
    _
  %s10 = ssub.s32 1, %s8
  %s11 = scalar_select 0, %s10, %s8
  $region1: #{tpu_custom_call.1} parent=0
    #allocation2 [shape = 'u8[8192]{0}', space=vmem, size = 0x2000, scoped, tag = 'output window, operand 0, single buffered']
    #allocation3 [shape = 's32[1]{0}', space=sflag, size = 0x4, scoped, tag = 'scoped memory for tpu_custom_call.1']
    %12 = vsyncpa [#allocation3], 0
    // Predicated region
    $region2: #{tpu_custom_call.1} parent=1 // pred_check
      _
    $region3: #{tpu_custom_call.1} parent=1 // pred_check_branch
      %14 = sbr.rel (0) target = $region5
    $region4: #{tpu_custom_call.1} parent=1 // pred_region
      _
    $region5: #{tpu_custom_call.1} parent=1 // pred_fallthru
      _
    // Predicated region
    $region6: #{tpu_custom_call.1} parent=1 // pred_check
      _
    $region7: #{tpu_custom_call.1} parent=1 // pred_check_branch
      %16 = sbr.rel (0) target = $region9
    $region8: #{tpu_custom_call.1} parent=1 // pred_region
      _
    $region9: #{tpu_custom_call.1} parent=1 // pred_fallthru
      _
    // Predicated region
    $region10: #{tpu_custom_call.1} parent=1 // pred_check
      _
    $region11: #{tpu_custom_call.1} parent=1 // pred_check_branch
      %18 = sbr.rel (0) target = $region13
    $region12: #{tpu_custom_call.1} parent=1 // pred_region
      _
    $region13: #{tpu_custom_call.1} parent=1 // pred_fallthru
      _
    // Predicated region
    $region14: #{tpu_custom_call.1} parent=1 // pred_check
      _
    $region15: #{tpu_custom_call.1} parent=1 // pred_check_branch
      %20 = sbr.rel (0) target = $region17
    $region16: #{tpu_custom_call.1} parent=1 // pred_region
      _
    $region17: #{tpu_custom_call.1} parent=1 // pred_fallthru
      _
    // Predicated region
    $region18: #{tpu_custom_call.1} parent=1 // pred_check
      _
    $region19: #{tpu_custom_call.1} parent=1 // pred_check_branch
      %22 = sbr.rel (0) target = $region21
    $region20: #{tpu_custom_call.1} parent=1 // pred_region
      _
    $region21: #{tpu_custom_call.1} parent=1 // pred_fallthru
      _
    // Predicated region
    $region22: #{tpu_custom_call.1} parent=1 // pred_check
      _
    $region23: #{tpu_custom_call.1} parent=1 // pred_check_branch
      %24 = sbr.rel (0) target = $region25
    $region24: #{tpu_custom_call.1} parent=1 // pred_region
      _
    $region25: #{tpu_custom_call.1} parent=1 // pred_fallthru
      _
    // Predicated region
    $region26: #{tpu_custom_call.1} parent=1 // pred_check
      _
    $region27: #{tpu_custom_call.1} parent=1 // pred_check_branch
      %26 = sbr.rel (0) target = $region29
    $region28: #{tpu_custom_call.1} parent=1 // pred_region
      _
    $region29: #{tpu_custom_call.1} parent=1 // pred_fallthru
      _
    %v27 = vld [vmem:[%s0] sm:$0x3f]
    %v28 = vld [vmem:[%s1] sm:$0xff]
    %v29 = vld [vmem:[%s1 + $0x8] sm:$0xff]
    %v30 = vld [vmem:[%s1 + $0x10] sm:$0xff]
    %v31 = vld [vmem:[%s1 + $0x18] sm:$0xff]
    %v32 = vld [vmem:[%s1 + $0x20] sm:$0xff]
    %v33 = vld [vmem:[%s1 + $0x28] sm:$0xff]
    %v34 = vld [vmem:[%s1 + $0x30] sm:$0xff]
    %v35 = vld [vmem:[%s1 + $0x38] sm:$0xff]
    %v36 = vld [vmem:[%s2] sm:$0xff]
    %v37 = vld [vmem:[%s2 + $0x8] sm:$0xff]
    %v38 = vld [vmem:[%s2 + $0x10] sm:$0xff]
    %v39 = vld [vmem:[%s2 + $0x18] sm:$0xff]
    %v40 = vld [vmem:[%s2 + $0x20] sm:$0xff]
    %v41 = vld [vmem:[%s2 + $0x28] sm:$0xff]
    %v42 = vld [vmem:[%s2 + $0x30] sm:$0xff]
    %v43 = vld [vmem:[%s2 + $0x38] sm:$0xff]
    %45 = vset.pattern.permute.xlu0 0
    %46 = vperm.xlu0 %45, %v36
    %v47 = vpop.permute.xlu0 %46
    %50 = vset.pattern.permute.xlu0 0
    %51 = vperm.xlu0 %50, %v37
    %v52 = vpop.permute.xlu0 %51
    %55 = vset.pattern.permute.xlu0 0
    %56 = vperm.xlu0 %55, %v38
    %v57 = vpop.permute.xlu0 %56
    %60 = vset.pattern.permute.xlu0 0
    %61 = vperm.xlu0 %60, %v39
    %v62 = vpop.permute.xlu0 %61
    %65 = vset.pattern.permute.xlu0 0
    %66 = vperm.xlu0 %65, %v40
    %v67 = vpop.permute.xlu0 %66
    %70 = vset.pattern.permute.xlu0 0
    %71 = vperm.xlu0 %70, %v41
    %v72 = vpop.permute.xlu0 %71
    %75 = vset.pattern.permute.xlu0 0
    %76 = vperm.xlu0 %75, %v42
    %v77 = vpop.permute.xlu0 %76
    %80 = vset.pattern.permute.xlu0 0
    %81 = vperm.xlu0 %80, %v43
    %v82 = vpop.permute.xlu0 %81
    %vm84 = vcmask 48128
    %v86 = vsel %vm84, %v28, 0
    %v89 = vsel %vm84, %v29, 0
    %v92 = vsel %vm84, %v30, 0
    %v95 = vsel %vm84, %v31, 0
    %v98 = vsel %vm84, %v32, 0
    %v101 = vsel %vm84, %v33, 0
    %v104 = vsel %vm84, %v34, 0
    %v107 = vsel %vm84, %v35, 0
    %vm109 = vcmask 1045504
    %v111 = vsel %vm109, %v27, 0
    %113 = vmatpush.msra.mxu0 0.0
    %114 = vmatpush.msra.mxu0 0.0
    %115 = vmatpush.msra.mxu0 0.0
    %116 = vmatpush.msra.mxu0 0.0
    %117 = vmatpush.msra.mxu0 0.0
    %118 = vmatpush.msra.mxu0 0.0
    %119 = vmatpush.msra.mxu0 0.0
    %120 = vmatpush.msra.mxu0 0.0
    %121 = vmatpush.msra.mxu0 0.0
    %122 = vmatpush.msra.mxu0 0.0
    %123 = vmatpush.msra.mxu0 0.0
    %124 = vmatpush.msra.mxu0 0.0
    %125 = vmatpush.msra.mxu0 0.0
    %126 = vmatpush.msra.mxu0 0.0
    %127 = vmatpush.msra.mxu0 0.0
    %128 = vmatpush.msra.mxu0 %v111
    %129 = vmatmul.f32.gmra.mxu0 %v86
    %v130 = vpop.f32.mrf.mxu0
    %v131 = vadd.f32 %v47, %v130
    %132 = vmatmul.f32.gmra.mxu0 %v89
    %v133 = vpop.f32.mrf.mxu0
    %v134 = vadd.f32 %v52, %v133
    %135 = vmatmul.f32.gmra.mxu0 %v92
    %v136 = vpop.f32.mrf.mxu0
    %v137 = vadd.f32 %v57, %v136
    %138 = vmatmul.f32.gmra.mxu0 %v95
    %v139 = vpop.f32.mrf.mxu0
    %v140 = vadd.f32 %v62, %v139
    %141 = vmatmul.f32.gmra.mxu0 %v98
    %v142 = vpop.f32.mrf.mxu0
    %v143 = vadd.f32 %v67, %v142
    %144 = vmatmul.f32.gmra.mxu0 %v101
    %v145 = vpop.f32.mrf.mxu0
    %v146 = vadd.f32 %v72, %v145
    %147 = vmatmul.f32.gmra.mxu0 %v104
    %v148 = vpop.f32.mrf.mxu0
    %v149 = vadd.f32 %v77, %v148
    %150 = vmatmul.f32.gmra.mxu0 %v107
    %v151 = vpop.f32.mrf.mxu0
    %v152 = vadd.f32 %v82, %v151
    %153 = vdwg.mxu0
    %v154 = vmax.f32 %v131, 0.0
    %v155 = vmax.f32 %v134, 0.0
    %v156 = vmax.f32 %v137, 0.0
    %v157 = vmax.f32 %v140, 0.0
    %v158 = vmax.f32 %v143, 0.0
    %v159 = vmax.f32 %v146, 0.0
    %v160 = vmax.f32 %v149, 0.0
    %v161 = vmax.f32 %v152, 0.0
    %v162 = vld [vmem:[%s3] sm:$0xff]
    %v163 = vld [vmem:[%s3 + $0x8] sm:$0xff]
    %v164 = vld [vmem:[%s3 + $0x10] sm:$0xff]
    %v165 = vld [vmem:[%s3 + $0x18] sm:$0xff]
    %v166 = vld [vmem:[%s4] sm:$0xff]
    %v167 = vld [vmem:[%s4 + $0x8] sm:$0xff]
    %v168 = vld [vmem:[%s4 + $0x10] sm:$0xff]
    %v169 = vld [vmem:[%s4 + $0x18] sm:$0xff]
    %171 = vset.pattern.permute.xlu0 0
    %172 = vperm.xlu0 %171, %v166
    %v173 = vpop.permute.xlu0 %172
    %176 = vset.pattern.permute.xlu0 0
    %177 = vperm.xlu0 %176, %v167
    %v178 = vpop.permute.xlu0 %177
    %181 = vset.pattern.permute.xlu0 0
    %182 = vperm.xlu0 %181, %v168
    %v183 = vpop.permute.xlu0 %182
    %186 = vset.pattern.permute.xlu0 0
    %187 = vperm.xlu0 %186, %v169
    %v188 = vpop.permute.xlu0 %187
    %vm190 = vcmask 523264
    %v192 = vsel %vm190, %v162, 0
    %v195 = vsel %vm190, %v163, 0
    %v198 = vsel %vm190, %v164, 0
    %v201 = vsel %vm190, %v165, 0
    %203 = vmatpush.msra.mxu0 0.0
    %204 = vmatpush.msra.mxu0 0.0
    %205 = vmatpush.msra.mxu0 0.0
    %206 = vmatpush.msra.mxu0 0.0
    %207 = vmatpush.msra.mxu0 0.0
    %208 = vmatpush.msra.mxu0 0.0
    %209 = vmatpush.msra.mxu0 0.0
    %210 = vmatpush.msra.mxu0 0.0
    %211 = vmatpush.msra.mxu0 %v161
    %212 = vmatpush.msra.mxu0 %v160
    %213 = vmatpush.msra.mxu0 %v159
    %214 = vmatpush.msra.mxu0 %v158
    %215 = vmatpush.msra.mxu0 %v157
    %216 = vmatpush.msra.mxu0 %v156
    %217 = vmatpush.msra.mxu0 %v155
    %218 = vmatpush.msra.mxu0 %v154
    %219 = vmatmul.f32.gmra.mxu0 %v192
    %v220 = vpop.f32.mrf.mxu0
    %v221 = vadd.f32 %v173, %v220
    %222 = vmatmul.f32.gmra.mxu0 %v195
    %v223 = vpop.f32.mrf.mxu0
    %v224 = vadd.f32 %v178, %v223
    %225 = vmatmul.f32.gmra.mxu0 %v198
    %v226 = vpop.f32.mrf.mxu0
    %v227 = vadd.f32 %v183, %v226
    %228 = vmatmul.f32.gmra.mxu0 %v201
    %v229 = vpop.f32.mrf.mxu0
    %v230 = vadd.f32 %v188, %v229
    %231 = vdwg.mxu0
    %v232 = vmax.f32 %v221, 0.0
    %v233 = vmax.f32 %v224, 0.0
    %v234 = vmax.f32 %v227, 0.0
    %v235 = vmax.f32 %v230, 0.0
    %v236 = vld [vmem:[%s5] sm:$0xff]
    %v237 = vld [vmem:[%s5 + $0x8] sm:$0xff]
    %v238 = vld [vmem:[%s6] sm:$0xff]
    %v239 = vld [vmem:[%s6 + $0x8] sm:$0xff]
    %241 = vset.pattern.permute.xlu0 0
    %242 = vperm.xlu0 %241, %v238
    %v243 = vpop.permute.xlu0 %242
    %246 = vset.pattern.permute.xlu0 0
    %247 = vperm.xlu0 %246, %v239
    %v248 = vpop.permute.xlu0 %247
    %vm250 = vcmask 261120
    %v252 = vsel %vm250, %v236, 0
    %v255 = vsel %vm250, %v237, 0
    %257 = vmatpush.msra.mxu0 0.0
    %258 = vmatpush.msra.mxu0 0.0
    %259 = vmatpush.msra.mxu0 0.0
    %260 = vmatpush.msra.mxu0 0.0
    %261 = vmatpush.msra.mxu0 0.0
    %262 = vmatpush.msra.mxu0 0.0
    %263 = vmatpush.msra.mxu0 0.0
    %264 = vmatpush.msra.mxu0 0.0
    %265 = vmatpush.msra.mxu0 0.0
    %266 = vmatpush.msra.mxu0 0.0
    %267 = vmatpush.msra.mxu0 0.0
    %268 = vmatpush.msra.mxu0 0.0
    %269 = vmatpush.msra.mxu0 %v235
    %270 = vmatpush.msra.mxu0 %v234
    %271 = vmatpush.msra.mxu0 %v233
    %272 = vmatpush.msra.mxu0 %v232
    %273 = vmatmul.f32.gmra.mxu0 %v252
    %v274 = vpop.f32.mrf.mxu0
    %v275 = vadd.f32 %v243, %v274
    %276 = vmatmul.f32.gmra.mxu0 %v255
    %v277 = vpop.f32.mrf.mxu0
    %v278 = vadd.f32 %v248, %v277
    %279 = vdwg.mxu0
    %280 = vst [vmem:[#allocation2] sm:$0xff] %v275
    %281 = vst [vmem:[#allocation2 + $0x8] sm:$0xff] %v278
    // Predicated region
    $region30: #{tpu_custom_call.1} parent=1 // pred_check
      _
    $region31: #{tpu_custom_call.1} parent=1 // pred_check_branch
      %283 = sbr.rel (0) target = $region33
    $region32: #{tpu_custom_call.1} parent=1 // pred_region
      %285 = vsyncadd [#allocation3], 0
      %s286 = sshll.u32 [#allocation2], 4
      %s287 = int_to_ptr.vmem [resolvable:$true] %s286
      %s288 = sshll.u32 %s7, 4
      %s289 = int_to_ptr.hbm [resolvable:$true] %s288
      %294 = dma.vmem_to_hbm [thread:$0]  %s287, 256, %s289, [#allocation3], 128, 128, 8
    $region33: #{tpu_custom_call.1} parent=1 // pred_fallthru
      _
    // Predicated region
    $region34: #{tpu_custom_call.1} parent=1 // pred_check
      _
    $region35: #{tpu_custom_call.1} parent=1 // pred_check_branch
      %296 = sbr.rel (0) target = $region37
    $region36: #{tpu_custom_call.1} parent=1 // pred_region
      %298 = dma.done [#allocation3], 256
    $region37: #{tpu_custom_call.1} parent=1 // pred_fallthru
      _
    %299 = vsyncpa [#allocation3], 1

</llo_original>
